<compile_context>
chip_gen: v7x
topology: tpu7x:2x2x1
jax: 0.10.0
libtpu: 0.0.40
codegen_flags: <defaults>
</compile_context>

<pallas_src>
import jax
import jax.numpy as jnp
from jax.experimental import pallas as pl
from jax.experimental.pallas import tpu as pltpu

_LANE = 128
_SUB = 8
_MAX_BLOCK_ROWS = 4096               # (4096,128) f32 = 2 MiB per input block
_VMEM_LIMIT_BYTES = 40 * 1024 * 1024  # safe on v5e/v6e/v7x, >> actual need
_NUM_PARTS = 2                        # leading "parallel" axis (v7x: 2 TCs)


def _round_up(x, m):
    return (x + m - 1) // m * m


def _sq_diff_sum(a2, b2, rows, br, num_parts, bpp, blocks_total):
    """Sum of (a2 - b2)^2 over the first `rows` rows of the blocked inputs."""
    full_blocks = rows // br                 # blocks that need no masking
    covered = num_parts * bpp * br           # rows the grid nominally covers
    need_mask = covered != rows
    last_block = blocks_total - 1

    def kernel(a_ref, b_ref, o_ref):
        p = pl.program_id(0)
        j = pl.program_id(1)
        g = p * bpp + j                      # global block id

        @pl.when(j == 0)
        def _init():
            o_ref[...] = jnp.zeros_like(o_ref)

        def accumulate(masked):
            d = a_ref[...].astype(jnp.float32) - b_ref[...].astype(jnp.float32)
            sq = d * d
            if masked:
                keep = (jax.lax.broadcasted_iota(jnp.int32, (br, _LANE), 0)
                        < (rows - g * br))
                sq = jnp.where(keep, sq, 0.0)
            # Tile-aligned reshape; axis-0 sum is pure VALU adds (no XLU).
            o_ref[...] += sq.reshape(br // _SUB, _SUB, _LANE).sum(axis=0)

        if need_mask:
            @pl.when(g < full_blocks)
            def _full():
                accumulate(False)

            @pl.when(g >= full_blocks)
            def _ragged():
                accumulate(True)
        else:
            accumulate(False)

    def in_index(p, j):
        # Clamp so any phantom trailing (p, j) step still issues a valid DMA;
        # its contribution is masked to zero inside the kernel.
        return (jnp.minimum(p * bpp + j, last_block), 0)

    partials = pl.pallas_call(
        kernel,
        out_shape=jax.ShapeDtypeStruct((num_parts * _SUB, _LANE), jnp.float32),
        grid=(num_parts, bpp),
        in_specs=[
            pl.BlockSpec((br, _LANE), in_index),
            pl.BlockSpec((br, _LANE), in_index),
        ],
        out_specs=pl.BlockSpec((_SUB, _LANE), lambda p, j: (p, 0)),
        compiler_params=pltpu.CompilerParams(
            dimension_semantics=("parallel", "arbitrary"),
            vmem_limit_bytes=_VMEM_LIMIT_BYTES,
        ),
    )(a2, b2)
    return jnp.sum(partials)


def mse_loss(im1, im2):
    """Mean squared error over all elements == nn.MSELoss()(im1, im2)."""
    a = jnp.asarray(im1)
    b = jnp.asarray(im2)
    assert a.shape == b.shape, "MSE requires matching shapes"
    if a.dtype != b.dtype:
        dt = jnp.result_type(a.dtype, b.dtype)
        a, b = a.astype(dt), b.astype(dt)
    if a.dtype.itemsize > 4:      # 64-bit dtypes: compute in f32 on TPU
        a, b = a.astype(jnp.float32), b.astype(jnp.float32)

    n = int(a.size)
    a = a.reshape(-1)
    b = b.reshape(-1)

    out_dtype = a.dtype if jnp.issubdtype(a.dtype, jnp.floating) else jnp.float32

    # Lane-aligned main region goes to the kernel; the (<128-element) tail, if
    # any, is folded in with plain jnp — no padded HBM copies of the inputs.
    rows = n // _LANE
    n_main = rows * _LANE
    tail_sum = jnp.float32(0.0)
    if n_main < n:
        ta = a[n_main:].astype(jnp.float32)
        tb = b[n_main:].astype(jnp.float32)
        tail_sum = jnp.sum((ta - tb) ** 2)

    total = tail_sum
    if rows > 0:
        am = a if n_main == n else a[:n_main]
        bm = b if n_main == n else b[:n_main]
        a2 = am.reshape(rows, _LANE)
        b2 = bm.reshape(rows, _LANE)

        # Block rows: multiple of the packed-sublane count for the dtype
        # (8 for 32-bit, 16 for bf16, 32 for int8/fp8), capped at ~2 MiB.
        pack = max(1, 4 // a.dtype.itemsize)
        sub_mult = _SUB * pack
        br = min(_MAX_BLOCK_ROWS, _round_up(rows, sub_mult))

        blocks_total = pl.cdiv(rows, br)
        num_parts = _NUM_PARTS if blocks_total >= _NUM_PARTS else 1
        bpp = pl.cdiv(blocks_total, num_parts)

        total = total + _sq_diff_sum(a2, b2, rows, br, num_parts, bpp,
                                     blocks_total)

    inv_n = jnp.float32(1.0 / n)   # 1/n computed in double on host, then cast
    return (total * inv_n).astype(out_dtype)


if __name__ == "__main__":
    key = jax.random.PRNGKey(0)
    k1, k2, k3, k4, k5, k6 = jax.random.split(key, 6)

    # Small image-like inputs (NCHW), consistent with the module.
    im1 = jax.random.uniform(k1, (2, 4, 16, 16), dtype=jnp.float32)
    im2 = jax.random.uniform(k2, (2, 4, 16, 16), dtype=jnp.float32)
    loss = mse_loss(im1, im2)
    jax.block_until_ready(loss)
    ref = jnp.mean((im1 - im2) ** 2)
    assert jnp.allclose(loss, ref, rtol=1e-6, atol=1e-6), (loss, ref)

    # Multi-block path: 2 parallel parts, ragged last block (rows=4200, br=4096).
    x1 = jax.random.uniform(k3, (2, 3, 256, 350), dtype=jnp.float32)
    x2 = jax.random.uniform(k4, (2, 3, 256, 350), dtype=jnp.float32)
    loss2 = mse_loss(x1, x2)
    jax.block_until_ready(loss2)
    ref2 = jnp.mean((x1 - x2) ** 2)
    assert jnp.allclose(loss2, ref2, rtol=1e-5, atol=1e-6), (loss2, ref2)

    # Unaligned element count (n % 128 != 0): kernel prefix + jnp tail.
    y1 = jax.random.uniform(k5, (2, 3, 17, 19), dtype=jnp.float32)
    y2 = jax.random.uniform(k6, (2, 3, 17, 19), dtype=jnp.float32)
    loss3 = mse_loss(y1, y2)
    jax.block_until_ready(loss3)
    ref3 = jnp.mean((y1 - y2) ** 2)
    assert jnp.allclose(loss3, ref3, rtol=1e-6, atol=1e-6), (loss3, ref3)

    # bf16 inputs: exercises the packed-sublane (16-row) block rounding.
    b1 = im1.astype(jnp.bfloat16)
    b2 = im2.astype(jnp.bfloat16)
    loss4 = mse_loss(b1, b2)
    jax.block_until_ready(loss4)
    ref4 = jnp.mean((b1.astype(jnp.float32) - b2.astype(jnp.float32)) ** 2)
    assert jnp.allclose(jnp.float32(loss4), ref4, rtol=1e-2, atol=1e-3), (loss4, ref4)

    print("KERNEL_OK")
</pallas_src>

<mosaic_0001>
module attributes {stable_mosaic.version = 11 : i64} {
  func.func @kernel(%arg0: i32, %arg1: i32, %arg2: memref<16x128xf32, #tpu.memory_space<vmem>>, %arg3: memref<16x128xf32, #tpu.memory_space<vmem>>, %arg4: memref<8x128xf32, #tpu.memory_space<vmem>>) attributes {dimension_semantics = [#tpu.dimension_semantics<parallel>, #tpu.dimension_semantics<arbitrary>], iteration_bounds = array<i64: 1, 1>, scalar_prefetch = 0 : i64, scratch_operands = 0 : i64, tpu.core_type = #tpu.core_type<tc>, window_params = [{transform_indices = @transform_0, window_bounds = array<i64: 16, 128>}, {transform_indices = @transform_1, window_bounds = array<i64: 16, 128>}, {transform_indices = @transform_2, window_bounds = array<i64: 8, 128>}]} {
    %c0_i32 = arith.constant 0 : i32
    %0 = arith.cmpi eq, %arg1, %c0_i32 : i32
    %1 = arith.extui %0 : i1 to i32
    %c0_i32_0 = arith.constant 0 : i32
    %2 = arith.cmpi ne, %1, %c0_i32_0 : i32
    scf.if %2 {
      %cst_8 = arith.constant 0.000000e+00 : f32
      %12 = vector.broadcast %cst_8 : f32 to vector<8x128xf32>
      %c0_9 = arith.constant 0 : index
      %c0_10 = arith.constant 0 : index
      %13 = vector.load %arg4[%c0_9, %c0_10] : memref<8x128xf32, #tpu.memory_space<vmem>>, vector<8x128xf32>
      tpu.vector_store %arg4[%c0_9, %c0_10], %12 {strides = array<i32>} : memref<8x128xf32, #tpu.memory_space<vmem>>, vector<8x128xf32>,
    } else {
    }
    %c0 = arith.constant 0 : index
    %c0_1 = arith.constant 0 : index
    %3 = vector.load %arg2[%c0, %c0_1] : memref<16x128xf32, #tpu.memory_space<vmem>>, vector<16x128xf32>
    %c0_2 = arith.constant 0 : index
    %c0_3 = arith.constant 0 : index
    %4 = vector.load %arg3[%c0_2, %c0_3] : memref<16x128xf32, #tpu.memory_space<vmem>>, vector<16x128xf32>
    %5 = arith.subf %3, %4 : vector<16x128xf32>
    %6 = arith.mulf %5, %5 : vector<16x128xf32>
    %c0_4 = arith.constant 0 : index
    %c0_5 = arith.constant 0 : index
    %7 = vector.load %arg4[%c0_4, %c0_5] : memref<8x128xf32, #tpu.memory_space<vmem>>, vector<8x128xf32>
    %8 = vector.shape_cast %6 : vector<16x128xf32> to vector<2x8x128xf32>
    %cst = arith.constant dense<0.000000e+00> : vector<8x128xf32>
    %9 = vector.multi_reduction <add>, %8, %cst [0] : vector<2x8x128xf32> to vector<8x128xf32>
    %10 = arith.addf %7, %9 : vector<8x128xf32>
    %c0_6 = arith.constant 0 : index
    %c0_7 = arith.constant 0 : index
    %11 = vector.load %arg4[%c0_6, %c0_7] : memref<8x128xf32, #tpu.memory_space<vmem>>, vector<8x128xf32>
    tpu.vector_store %arg4[%c0_6, %c0_7], %10 {strides = array<i32>} : memref<8x128xf32, #tpu.memory_space<vmem>>, vector<8x128xf32>,
    return
  }
  func.func @transform_0(%arg0: i32, %arg1: i32) -> (i32, i32) {
    %c1_i32 = arith.constant 1 : i32
    %0 = arith.muli %arg0, %c1_i32 : i32
    %1 = arith.addi %0, %arg1 : i32
    %c0_i32 = arith.constant 0 : i32
    %2 = arith.minsi %1, %c0_i32 : i32
    %c0_i32_0 = arith.constant 0 : i32
    %c0_i32_1 = arith.constant 0 : i32
    return %2, %c0_i32_0 : i32, i32
  }
  func.func @transform_1(%arg0: i32, %arg1: i32) -> (i32, i32) {
    %c1_i32 = arith.constant 1 : i32
    %0 = arith.muli %arg0, %c1_i32 : i32
    %1 = arith.addi %0, %arg1 : i32
    %c0_i32 = arith.constant 0 : i32
    %2 = arith.minsi %1, %c0_i32 : i32
    %c0_i32_0 = arith.constant 0 : i32
    %c0_i32_1 = arith.constant 0 : i32
    return %2, %c0_i32_0 : i32, i32
  }
  func.func @transform_2(%arg0: i32, %arg1: i32) -> (i32, i32) {
    %c0_i32 = arith.constant 0 : i32
    %c0_i32_0 = arith.constant 0 : i32
    return %arg0, %c0_i32 : i32, i32
  }
}

</mosaic_0001>

<llo_original>
// kernel: tpu_custom_call.1
$region0: #{tpu_custom_call.1}
  #allocation0 [shape = 'u32[]', space=smem, size = 0x4, offset = 0x4, fixed_abs, tag = 'smem constant byte address 0x4 - core index']
  #allocation1 [shape = 'u32[144,128]{1,0:T(1,128)}', space=vmem, size = 0x12000, scoped, tag = 'internal scratch']
  %s0 = inlined_call_operand.hbm [shape: f32[16,128], index: 0, kind: input, shape index: {}]
  %s1 = inlined_call_operand.hbm [shape: f32[16,128], index: 1, kind: input, shape index: {}]
  %s2 = inlined_call_operand.hbm [shape: f32[8,128], index: 2, kind: output, shape index: {}]
  %s3 = sld [smem:[#allocation0]]
  $region30: #{tpu_custom_call.1} parent=0
    _
  %s5 = ssub.s32 1, %s3
  %s6 = scalar_select 0, %s5, %s3
  $region1: #{tpu_custom_call.1} parent=0
    #allocation2 [shape = 'u8[8192]{0}', space=vmem, size = 0x2000, scoped, tag = 'input window, operand 0, single buffered']
    #allocation3 [shape = 's32[1]{0}', space=sflag, size = 0x4, scoped, tag = 'scoped memory for tpu_custom_call.1']
    #allocation4 [shape = 's32[1]{0}', space=sflag, size = 0x4, scoped, tag = 'scoped memory for tpu_custom_call.1']
    #allocation5 [shape = 'u8[8192]{0}', space=vmem, size = 0x2000, scoped, tag = 'input window, operand 1, single buffered']
    #allocation6 [shape = 's32[1]{0}', space=sflag, size = 0x4, scoped, tag = 'scoped memory for tpu_custom_call.1']
    #allocation7 [shape = 'u8[4096]{0}', space=vmem, size = 0x1000, scoped, tag = 'output window, operand 0, single buffered']
    %7 = vsyncpa [#allocation3], 0
    %8 = vsyncpa [#allocation6], 0
    %9 = vsyncpa [#allocation4], 0
    // Predicated region
    $region2: #{tpu_custom_call.1} parent=1 // pred_check
      _
    $region3: #{tpu_custom_call.1} parent=1 // pred_check_branch
      %11 = sbr.rel (0) target = $region5
    $region4: #{tpu_custom_call.1} parent=1 // pred_region
      %s12 = sadd.s32 0, 0
      %p13 = scmp.lt.s32.totalorder %s12, 0
      %s14 = scalar_select %p13, %s12, 0
      %s15 = smul.u32 2, %s14
      %s17 = ssub.s32 256, 256
      %18 = vsyncadd [#allocation3], %s17
      %s19 = smul.addr %s15, 128
      %s20 = scalar_lea.hbm %s0, %s19
      %s21 = sshll.u32 [#allocation2], 4
      %s22 = int_to_ptr.vmem [resolvable:$true] %s21
      %27 = dma.hbm_to_vmem [thread:$0]  %s20, 256, %s22, [#allocation3], 128, 128, 8
    $region5: #{tpu_custom_call.1} parent=1 // pred_fallthru
      _
    // Predicated region
    $region6: #{tpu_custom_call.1} parent=1 // pred_check
      _
    $region7: #{tpu_custom_call.1} parent=1 // pred_check_branch
      %29 = sbr.rel (0) target = $region9
    $region8: #{tpu_custom_call.1} parent=1 // pred_region
      %s30 = sadd.s32 0, 0
      %p31 = scmp.lt.s32.totalorder %s30, 0
      %s32 = scalar_select %p31, %s30, 0
      %s33 = smul.u32 2, %s32
      %s35 = ssub.s32 256, 256
      %36 = vsyncadd [#allocation6], %s35
      %s37 = smul.addr %s33, 128
      %s38 = scalar_lea.hbm %s1, %s37
      %s39 = sshll.u32 [#allocation5], 4
      %s40 = int_to_ptr.vmem [resolvable:$true] %s39
      %45 = dma.hbm_to_vmem [thread:$0]  %s38, 256, %s40, [#allocation6], 128, 128, 8
    $region9: #{tpu_custom_call.1} parent=1 // pred_fallthru
      _
    // Predicated region
    $region10: #{tpu_custom_call.1} parent=1 // pred_check
      _
    $region11: #{tpu_custom_call.1} parent=1 // pred_check_branch
      %47 = sbr.rel (0) target = $region13
    $region12: #{tpu_custom_call.1} parent=1 // pred_region
      %48 = dma.done [#allocation3], 256
    $region13: #{tpu_custom_call.1} parent=1 // pred_fallthru
      _
    // Predicated region
    $region14: #{tpu_custom_call.1} parent=1 // pred_check
      _
    $region15: #{tpu_custom_call.1} parent=1 // pred_check_branch
      %50 = sbr.rel (0) target = $region17
    $region16: #{tpu_custom_call.1} parent=1 // pred_region
      %51 = dma.done [#allocation6], 256
    $region17: #{tpu_custom_call.1} parent=1 // pred_fallthru
      _
    %s52 = sadd.s32 0, 0
    %p53 = scmp.lt.s32.totalorder %s52, 0
    %s54 = scalar_select %p53, %s52, 0
    %s55 = smul.u32 2, %s54
    %s56 = sadd.s32 0, 0
    %p57 = scmp.lt.s32.totalorder %s56, 0
    %s58 = scalar_select %p57, %s56, 0
    %s59 = smul.u32 2, %s58
    %p60 = scmp.eq.s32.totalorder 0, 0
    // Predicated region
    $region18: #{tpu_custom_call.1} parent=1 // pred_check
      %p61 = pneg %p60
    $region19: #{tpu_custom_call.1} parent=1 // pred_check_branch
      %63 = sbr.rel (%p61) target = $region21
    $region20: #{tpu_custom_call.1} parent=1 // pred_region
      %64 = vst [vmem:[#allocation7] sm:$0xff] 0.0
    $region21: #{tpu_custom_call.1} parent=1 // pred_fallthru
      _
    %v65 = vld [vmem:[#allocation2] sm:$0xff]
    %v66 = vld [vmem:[#allocation2 + $0x8] sm:$0xff]
    %v67 = vld [vmem:[#allocation5] sm:$0xff]
    %v68 = vld [vmem:[#allocation5 + $0x8] sm:$0xff]
    %v69 = vsub.f32 %v65, %v67
    %v70 = vsub.f32 %v66, %v68
    %v71 = vmul.f32 %v69, %v69
    %v72 = vmul.f32 %v70, %v70
    %v73 = vld [vmem:[#allocation7] sm:$0xff]
    %v74 = vadd.f32 %v71, %v72
    %v75 = vadd.f32 %v73, %v74
    %76 = vst [vmem:[#allocation7] sm:$0xff] %v75
    // Predicated region
    $region22: #{tpu_custom_call.1} parent=1 // pred_check
      _
    $region23: #{tpu_custom_call.1} parent=1 // pred_check_branch
      %78 = sbr.rel (0) target = $region25
    $region24: #{tpu_custom_call.1} parent=1 // pred_region
      %s80 = ssub.s32 128, 128
      %81 = vsyncadd [#allocation4], %s80
      %s83 = sshll.u32 [#allocation7], 4
      %s84 = int_to_ptr.vmem [resolvable:$true] %s83
      %86 = dma.vmem_to_hbm [thread:$0]  %s84, 128, %s2, [#allocation4]
    $region25: #{tpu_custom_call.1} parent=1 // pred_fallthru
      _
    // Predicated region
    $region26: #{tpu_custom_call.1} parent=1 // pred_check
      _
    $region27: #{tpu_custom_call.1} parent=1 // pred_check_branch
      %88 = sbr.rel (0) target = $region29
    $region28: #{tpu_custom_call.1} parent=1 // pred_region
      %89 = dma.done [#allocation4], 128
    $region29: #{tpu_custom_call.1} parent=1 // pred_fallthru
      _
    %90 = vsyncpa [#allocation3], 1
    %91 = vsyncpa [#allocation6], 1
    %92 = vsyncpa [#allocation4], 1

</llo_original>
